<compile_context>
chip_gen: v7x
topology: tpu7x:2x2x1
jax: 0.10.0
libtpu: 0.0.40
codegen_flags: <defaults>
</compile_context>

<pallas_src>
import functools

import jax
import jax.numpy as jnp
from jax.experimental import pallas as pl
from jax.experimental.pallas import tpu as pltpu


def _round_up(x, m):
    return (x + m - 1) // m * m


def _cdiv(a, b):
    return (a + b - 1) // b


def _pick_tile_sublanes(C, tile_pixels, D2, n_splits):
    """Sublane rows per tile (each row = 128 pixels).  Multiple of 16 so bf16
    blocks stay (16, 128)-tile aligned.  Capped so double-buffered bf16 inputs
    plus ~6 live f32 temporaries stay around <= 20 MiB (headroom inside the
    48 MiB vmem limit on v7x; well inside v5e / v6e)."""
    req = max(16, _round_up(int(tile_pixels), 2048) // 128)
    bytes_per_row = 128 * (2 * (2 * C + 2) * 2 + 24 * C)
    cap = max(16, ((20 * 1024 * 1024) // bytes_per_row) // 16 * 16)
    full = _round_up(_cdiv(D2, n_splits), 16)
    return int(max(16, min(req, cap, full)))


def _tc_miou_kernel(pw_ref, tgt_ref, msk_ref, num_ref, den_ref, *, n_chunks):
    """One (batch, pixel-split, pixel-tile) step.

    pw_ref / tgt_ref : (C, TPS, 128) warped-pred / target logits (bf16)
    msk_ref          : (2, TPS, 128) [flow-warp validity ; != ignore_index]
    num_ref/den_ref  : (C, 8, 128) f32 per-class partial accumulators (outputs)
    """
    j = pl.program_id(2)          # pixel-tile index (reduction axis)

    @pl.when(j == 0)
    def _init():
        num_ref[...] = jnp.zeros_like(num_ref)
        den_ref[...] = jnp.zeros_like(den_ref)

    pz = pw_ref[...].astype(jnp.float32)          # (C, TPS, 128)
    tz = tgt_ref[...].astype(jnp.float32)         # (C, TPS, 128)
    m = msk_ref[...].astype(jnp.float32)          # (2, TPS, 128)

    # Channel softmax over the leading C axis: element-wise vreg combines
    # (pure VPU); EUP approx reciprocal keeps the normalisation off the VALU.
    pz = jnp.exp(pz - jnp.max(pz, axis=0, keepdims=True))
    pz = pz * pl.reciprocal(jnp.sum(pz, axis=0, keepdims=True), approx=True)
    tz = jnp.exp(tz - jnp.max(tz, axis=0, keepdims=True))
    tz = tz * pl.reciprocal(jnp.sum(tz, axis=0, keepdims=True), approx=True)

    pw = pz * m[0:1]      # warped preds; flow_warp filling_value = 0
    tm = tz * m[1:2]      # targets with ignore mask applied
    prod = pw * tm        # all operands >= 0 -> reference's abs() is a no-op
    dnm = pw + tm - prod

    # Reduce TPS sublane rows down to 8 with plain vector adds (no XLU here);
    # the cross-lane reduce + exact divide happen once in the wrapper.
    num_p = prod[:, 0:8, :]
    den_p = dnm[:, 0:8, :]
    for g in range(1, n_chunks):
        lo = g * 8
        num_p = num_p + prod[:, lo:lo + 8, :]
        den_p = den_p + dnm[:, lo:lo + 8, :]

    num_ref[...] += num_p
    den_ref[...] += den_p


def tc_loss_pallas(preds, targets, opt_flow, gt_labels, *,
                   ignore_index=255, loss_weight=1.0, tile_pixels=32768,
                   n_splits=2, hbm_dtype=jnp.bfloat16):
    """preds/targets: (N,C,H,W) float; opt_flow: (N,H,W,2); gt_labels: (N,H,W) int."""
    N, C, H, W = preds.shape
    HW = H * W

    # ---- mmcv.flow_warp (nearest, filling_value=0): source indices + validity
    of = opt_flow.astype(jnp.float32)
    row = jnp.arange(H, dtype=jnp.float32)[:, None]
    col = jnp.arange(W, dtype=jnp.float32)[None, :]
    dx = row + of[..., 1]                                          # (N, H, W)
    dy = col + of[..., 0]
    sx = jnp.floor(dx)
    sy = jnp.floor(dy)
    valid = (sx >= 0.0) & (sx < H - 1) & (sy >= 0.0) & (sy < W - 1)
    ri = jnp.clip(jnp.round(dx).astype(jnp.int32), 0, H - 1)
    ci = jnp.clip(jnp.round(dy).astype(jnp.int32), 0, W - 1)
    src = (ri * W + ci).reshape(N, HW)                             # (N, HW)

    # softmax(gather(x)) == gather(softmax(x)) per pixel, so gather the *raw*
    # logits; cast to bf16 first so gather output + kernel reads are half-width.
    # TODO(synk): if xprof shows this XLA gather dominating, fold it into the
    # kernel with scalar-prefetched src indices + manual DMA.
    p_flat = preds.astype(hbm_dtype).reshape(N, C, HW)
    t_flat = targets.astype(hbm_dtype).reshape(N, C, HW)
    pw_logits = jax.vmap(lambda x, s: x[:, s])(p_flat, src)        # (N, C, HW)

    masks = jnp.stack(
        [valid.reshape(N, HW),
         gt_labels.reshape(N, HW) != ignore_index],
        axis=1).astype(hbm_dtype)                                  # (N, 2, HW) 0/1

    # ---- pixel tiling: lane dim = 128, sublane rows = TPS, C stays leading --
    D2 = _cdiv(HW, 128)
    TPS = _pick_tile_sublanes(C, tile_pixels, D2, n_splits)
    n_tiles = _cdiv(D2, n_splits * TPS)
    D2p = n_splits * n_tiles * TPS
    HWp = D2p * 128
    if HWp != HW:
        pad = ((0, 0), (0, 0), (0, HWp - HW))
        pw_logits = jnp.pad(pw_logits, pad)   # zero masks -> pads contribute 0
        t_flat = jnp.pad(t_flat, pad)
        masks = jnp.pad(masks, pad)

    pw4 = pw_logits.reshape(N, C, D2p, 128)
    t4 = t_flat.reshape(N, C, D2p, 128)
    m4 = masks.reshape(N, 2, D2p, 128)

    kernel = functools.partial(_tc_miou_kernel, n_chunks=TPS // 8)

    num_out, den_out = pl.pallas_call(
        kernel,
        out_shape=(jax.ShapeDtypeStruct((N, n_splits, C, 8, 128), jnp.float32),
                   jax.ShapeDtypeStruct((N, n_splits, C, 8, 128), jnp.float32)),
        grid_spec=pltpu.PrefetchScalarGridSpec(
            num_scalar_prefetch=0,
            grid=(N, n_splits, n_tiles),
            in_specs=[
                pl.BlockSpec((None, C, TPS, 128),
                             lambda b, s, j: (b, 0, s * n_tiles + j, 0)),
                pl.BlockSpec((None, C, TPS, 128),
                             lambda b, s, j: (b, 0, s * n_tiles + j, 0)),
                pl.BlockSpec((None, 2, TPS, 128),
                             lambda b, s, j: (b, 0, s * n_tiles + j, 0)),
            ],
            out_specs=(
                pl.BlockSpec((None, None, C, 8, 128),
                             lambda b, s, j: (b, s, 0, 0, 0)),
                pl.BlockSpec((None, None, C, 8, 128),
                             lambda b, s, j: (b, s, 0, 0, 0)),
            ),
        ),
        compiler_params=pltpu.CompilerParams(
            dimension_semantics=("parallel", "parallel", "arbitrary"),
            vmem_limit_bytes=48 * 1024 * 1024),
    )(pw4, t4, m4)

    # Exact finalize (tiny): fold splits + lanes, per-class divide, batch mean.
    num = jnp.sum(num_out, axis=(1, 3, 4))                         # (N, C)
    den = jnp.sum(den_out, axis=(1, 3, 4))
    miou = jnp.sum(num / den, axis=1) / C
    losses = 1.0 - miou                                            # (N,)
    # TODO(synk): weight / class_weight / avg_factor / reduction_override of
    # weight_reduce_loss are not plumbed; default 'mean' reduction only.
    return loss_weight * jnp.mean(losses)


def tc_loss_reference(preds, targets, opt_flow, gt_labels,
                      *, ignore_index=255, loss_weight=1.0):
    """Pure-JAX f32 reference mirroring TCLoss.forward (nearest-mode flow_warp)."""
    N, C, H, W = preds.shape
    p = jax.nn.softmax(preds.astype(jnp.float32), axis=1)
    t = jax.nn.softmax(targets.astype(jnp.float32), axis=1)

    row = jnp.arange(H, dtype=jnp.float32)[:, None] * jnp.ones((1, W), jnp.float32)
    col = jnp.ones((H, 1), jnp.float32) * jnp.arange(W, dtype=jnp.float32)[None, :]

    def warp_one(img, fl):  # img (C,H,W), fl (H,W,2)
        dx = row + fl[..., 1]
        dy = col + fl[..., 0]
        sx = jnp.floor(dx)
        sy = jnp.floor(dy)
        valid = (sx >= 0) & (sx < H - 1) & (sy >= 0) & (sy < W - 1)
        ri = jnp.clip(jnp.round(dx).astype(jnp.int32), 0, H - 1)
        ci = jnp.clip(jnp.round(dy).astype(jnp.int32), 0, W - 1)
        gathered = img[:, ri, ci]
        return jnp.where(valid[None], gathered, 0.0)

    pw = jax.vmap(warp_one)(p, opt_flow.astype(jnp.float32))
    mask = (gt_labels != ignore_index).astype(jnp.float32)[:, None]
    tm = t * mask
    num = jnp.sum(jnp.abs(pw * tm), axis=(2, 3))
    den = jnp.sum(jnp.abs(pw + tm - pw * tm), axis=(2, 3))
    miou = jnp.sum(num / den, axis=1) / C
    loss = 1.0 - miou
    return loss_weight * jnp.mean(loss)


if __name__ == "__main__":
    root = jax.random.PRNGKey(0)

    def make_inputs(key, N, C, H, W):
        kp, kt, kf, kg, km = jax.random.split(key, 5)
        preds = jax.random.normal(kp, (N, C, H, W), jnp.float32)
        targets = jax.random.normal(kt, (N, C, H, W), jnp.float32)
        opt_flow = 3.0 * jax.random.normal(kf, (N, H, W, 2), jnp.float32)
        gt = jax.random.randint(kg, (N, H, W), 0, C, jnp.int32)
        gt = jnp.where(jax.random.bernoulli(km, 0.2, (N, H, W)), 255, gt)
        return preds, targets, opt_flow, gt

    cases = [
        ((2, 4, 16, 16), 32768),   # small image, single tile per split (padded)
        ((2, 3, 10, 12), 32768),   # HW not a multiple of 128 -> padded pixel axis
        ((1, 5, 64, 96), 2048),    # N=1 (pixel-split parallel) + multi-tile accumulation
    ]
    keys = jax.random.split(root, len(cases))
    ref_fn = jax.jit(tc_loss_reference)
    for (shape, tp), k in zip(cases, keys):
        N, C, H, W = shape
        preds, targets, opt_flow, gt = make_inputs(k, N, C, H, W)
        fn = jax.jit(functools.partial(tc_loss_pallas, tile_pixels=tp))
        loss = jax.block_until_ready(fn(preds, targets, opt_flow, gt))
        ref = jax.block_until_ready(ref_fn(preds, targets, opt_flow, gt))
        assert jnp.isfinite(loss), f"non-finite loss for {shape}: {loss}"
        # Tolerance covers the bf16 HBM path + approx-reciprocal softmax norm
        # (the final num/den divide and batch mean are exact, in the wrapper).
        assert jnp.allclose(loss, ref, rtol=2e-2, atol=5e-3), (shape, loss, ref)
    print("KERNEL_OK")
</pallas_src>

<mosaic_0001>
module attributes {stable_mosaic.version = 11 : i64} {
  func.func @_tc_miou_kernel(%arg0: i32, %arg1: i32, %arg2: i32, %arg3: memref<1x4x16x128xbf16, #tpu.memory_space<vmem>>, %arg4: memref<1x4x16x128xbf16, #tpu.memory_space<vmem>>, %arg5: memref<1x2x16x128xbf16, #tpu.memory_space<vmem>>, %arg6: memref<1x1x4x8x128xf32, #tpu.memory_space<vmem>>, %arg7: memref<1x1x4x8x128xf32, #tpu.memory_space<vmem>>) attributes {dimension_semantics = [#tpu.dimension_semantics<parallel>, #tpu.dimension_semantics<parallel>, #tpu.dimension_semantics<arbitrary>], iteration_bounds = array<i64: 2, 2, 1>, scalar_prefetch = 0 : i64, scratch_operands = 0 : i64, tpu.core_type = #tpu.core_type<tc>, window_params = [{transform_indices = @transform_0, window_bounds = array<i64: 1, 4, 16, 128>}, {transform_indices = @transform_1, window_bounds = array<i64: 1, 4, 16, 128>}, {transform_indices = @transform_2, window_bounds = array<i64: 1, 2, 16, 128>}, {transform_indices = @transform_3, window_bounds = array<i64: 1, 1, 4, 8, 128>}, {transform_indices = @transform_4, window_bounds = array<i64: 1, 1, 4, 8, 128>}]} {
    %c0_i32 = arith.constant 0 : i32
    %0 = arith.cmpi eq, %arg2, %c0_i32 : i32
    %1 = arith.extui %0 : i1 to i32
    %c0_i32_0 = arith.constant 0 : i32
    %2 = arith.cmpi ne, %1, %c0_i32_0 : i32
    scf.if %2 {
      %cst_35 = arith.constant 0.000000e+00 : f32
      %59 = vector.broadcast %cst_35 : f32 to vector<4x8x128xf32>
      %c0_36 = arith.constant 0 : index
      %c0_37 = arith.constant 0 : index
      %c0_38 = arith.constant 0 : index
      %c0_39 = arith.constant 0 : index
      %c0_40 = arith.constant 0 : index
      %60 = vector.load %arg6[%c0_36, %c0_37, %c0_38, %c0_39, %c0_40] : memref<1x1x4x8x128xf32, #tpu.memory_space<vmem>>, vector<1x1x4x8x128xf32>
      %61 = vector.shape_cast %60 : vector<1x1x4x8x128xf32> to vector<4x8x128xf32>
      %62 = vector.shape_cast %59 : vector<4x8x128xf32> to vector<1x1x4x8x128xf32>
      tpu.vector_store %arg6[%c0_36, %c0_37, %c0_38, %c0_39, %c0_40], %62 {strides = array<i32>} : memref<1x1x4x8x128xf32, #tpu.memory_space<vmem>>, vector<1x1x4x8x128xf32>,
      %cst_41 = arith.constant 0.000000e+00 : f32
      %63 = vector.broadcast %cst_41 : f32 to vector<4x8x128xf32>
      %c0_42 = arith.constant 0 : index
      %c0_43 = arith.constant 0 : index
      %c0_44 = arith.constant 0 : index
      %c0_45 = arith.constant 0 : index
      %c0_46 = arith.constant 0 : index
      %64 = vector.load %arg7[%c0_42, %c0_43, %c0_44, %c0_45, %c0_46] : memref<1x1x4x8x128xf32, #tpu.memory_space<vmem>>, vector<1x1x4x8x128xf32>
      %65 = vector.shape_cast %64 : vector<1x1x4x8x128xf32> to vector<4x8x128xf32>
      %66 = vector.shape_cast %63 : vector<4x8x128xf32> to vector<1x1x4x8x128xf32>
      tpu.vector_store %arg7[%c0_42, %c0_43, %c0_44, %c0_45, %c0_46], %66 {strides = array<i32>} : memref<1x1x4x8x128xf32, #tpu.memory_space<vmem>>, vector<1x1x4x8x128xf32>,
    } else {
    }
    %c0 = arith.constant 0 : index
    %c0_1 = arith.constant 0 : index
    %c0_2 = arith.constant 0 : index
    %c0_3 = arith.constant 0 : index
    %3 = vector.load %arg3[%c0, %c0_1, %c0_2, %c0_3] : memref<1x4x16x128xbf16, #tpu.memory_space<vmem>>, vector<1x4x16x128xbf16>
    %4 = vector.shape_cast %3 : vector<1x4x16x128xbf16> to vector<4x16x128xbf16>
    %5 = arith.extf %4 : vector<4x16x128xbf16> to vector<4x16x128xf32>
    %c0_4 = arith.constant 0 : index
    %c0_5 = arith.constant 0 : index
    %c0_6 = arith.constant 0 : index
    %c0_7 = arith.constant 0 : index
    %6 = vector.load %arg4[%c0_4, %c0_5, %c0_6, %c0_7] : memref<1x4x16x128xbf16, #tpu.memory_space<vmem>>, vector<1x4x16x128xbf16>
    %7 = vector.shape_cast %6 : vector<1x4x16x128xbf16> to vector<4x16x128xbf16>
    %8 = arith.extf %7 : vector<4x16x128xbf16> to vector<4x16x128xf32>
    %c0_8 = arith.constant 0 : index
    %c0_9 = arith.constant 0 : index
    %c0_10 = arith.constant 0 : index
    %c0_11 = arith.constant 0 : index
    %9 = vector.load %arg5[%c0_8, %c0_9, %c0_10, %c0_11] : memref<1x2x16x128xbf16, #tpu.memory_space<vmem>>, vector<1x2x16x128xbf16>
    %10 = vector.shape_cast %9 : vector<1x2x16x128xbf16> to vector<2x16x128xbf16>
    %11 = arith.extf %10 : vector<2x16x128xbf16> to vector<2x16x128xf32>
    %cst = arith.constant dense<0xFF800000> : vector<16x128xf32>
    %12 = vector.multi_reduction <maximumf>, %5, %cst [0] : vector<4x16x128xf32> to vector<16x128xf32>
    %13 = vector.shape_cast %12 : vector<16x128xf32> to vector<1x16x128xf32>
    %14 = vector.broadcast %13 : vector<1x16x128xf32> to vector<4x16x128xf32>
    %15 = arith.subf %5, %14 : vector<4x16x128xf32>
    %16 = math.exp %15 : vector<4x16x128xf32>
    %cst_12 = arith.constant dense<0.000000e+00> : vector<16x128xf32>
    %17 = vector.multi_reduction <add>, %16, %cst_12 [0] : vector<4x16x128xf32> to vector<16x128xf32>
    %18 = vector.shape_cast %17 : vector<16x128xf32> to vector<1x16x128xf32>
    %19 = tpu.reciprocal %18 {approx = true} : vector<1x16x128xf32> -> vector<1x16x128xf32>
    %20 = vector.broadcast %19 : vector<1x16x128xf32> to vector<4x16x128xf32>
    %21 = arith.mulf %16, %20 : vector<4x16x128xf32>
    %cst_13 = arith.constant dense<0xFF800000> : vector<16x128xf32>
    %22 = vector.multi_reduction <maximumf>, %8, %cst_13 [0] : vector<4x16x128xf32> to vector<16x128xf32>
    %23 = vector.shape_cast %22 : vector<16x128xf32> to vector<1x16x128xf32>
    %24 = vector.broadcast %23 : vector<1x16x128xf32> to vector<4x16x128xf32>
    %25 = arith.subf %8, %24 : vector<4x16x128xf32>
    %26 = math.exp %25 : vector<4x16x128xf32>
    %cst_14 = arith.constant dense<0.000000e+00> : vector<16x128xf32>
    %27 = vector.multi_reduction <add>, %26, %cst_14 [0] : vector<4x16x128xf32> to vector<16x128xf32>
    %28 = vector.shape_cast %27 : vector<16x128xf32> to vector<1x16x128xf32>
    %29 = tpu.reciprocal %28 {approx = true} : vector<1x16x128xf32> -> vector<1x16x128xf32>
    %30 = vector.broadcast %29 : vector<1x16x128xf32> to vector<4x16x128xf32>
    %31 = arith.mulf %26, %30 : vector<4x16x128xf32>
    %32 = vector.extract_strided_slice %11 {offsets = [0, 0, 0], sizes = [1, 16, 128], strides = [1, 1, 1]} : vector<2x16x128xf32> to vector<1x16x128xf32>
    %33 = vector.broadcast %32 : vector<1x16x128xf32> to vector<4x16x128xf32>
    %34 = arith.mulf %21, %33 : vector<4x16x128xf32>
    %35 = vector.extract_strided_slice %11 {offsets = [1, 0, 0], sizes = [1, 16, 128], strides = [1, 1, 1]} : vector<2x16x128xf32> to vector<1x16x128xf32>
    %36 = vector.broadcast %35 : vector<1x16x128xf32> to vector<4x16x128xf32>
    %37 = arith.mulf %31, %36 : vector<4x16x128xf32>
    %38 = arith.mulf %34, %37 : vector<4x16x128xf32>
    %39 = arith.addf %34, %37 : vector<4x16x128xf32>
    %40 = arith.subf %39, %38 : vector<4x16x128xf32>
    %41 = vector.extract_strided_slice %38 {offsets = [0, 0, 0], sizes = [4, 8, 128], strides = [1, 1, 1]} : vector<4x16x128xf32> to vector<4x8x128xf32>
    %42 = vector.extract_strided_slice %40 {offsets = [0, 0, 0], sizes = [4, 8, 128], strides = [1, 1, 1]} : vector<4x16x128xf32> to vector<4x8x128xf32>
    %43 = vector.extract_strided_slice %38 {offsets = [0, 8, 0], sizes = [4, 8, 128], strides = [1, 1, 1]} : vector<4x16x128xf32> to vector<4x8x128xf32>
    %44 = arith.addf %41, %43 : vector<4x8x128xf32>
    %45 = vector.extract_strided_slice %40 {offsets = [0, 8, 0], sizes = [4, 8, 128], strides = [1, 1, 1]} : vector<4x16x128xf32> to vector<4x8x128xf32>
    %46 = arith.addf %42, %45 : vector<4x8x128xf32>
    %c0_15 = arith.constant 0 : index
    %c0_16 = arith.constant 0 : index
    %c0_17 = arith.constant 0 : index
    %c0_18 = arith.constant 0 : index
    %c0_19 = arith.constant 0 : index
    %47 = vector.load %arg6[%c0_15, %c0_16, %c0_17, %c0_18, %c0_19] : memref<1x1x4x8x128xf32, #tpu.memory_space<vmem>>, vector<1x1x4x8x128xf32>
    %48 = vector.shape_cast %47 : vector<1x1x4x8x128xf32> to vector<4x8x128xf32>
    %49 = arith.addf %48, %44 : vector<4x8x128xf32>
    %c0_20 = arith.constant 0 : index
    %c0_21 = arith.constant 0 : index
    %c0_22 = arith.constant 0 : index
    %c0_23 = arith.constant 0 : index
    %c0_24 = arith.constant 0 : index
    %50 = vector.load %arg6[%c0_20, %c0_21, %c0_22, %c0_23, %c0_24] : memref<1x1x4x8x128xf32, #tpu.memory_space<vmem>>, vector<1x1x4x8x128xf32>
    %51 = vector.shape_cast %50 : vector<1x1x4x8x128xf32> to vector<4x8x128xf32>
    %52 = vector.shape_cast %49 : vector<4x8x128xf32> to vector<1x1x4x8x128xf32>
    tpu.vector_store %arg6[%c0_20, %c0_21, %c0_22, %c0_23, %c0_24], %52 {strides = array<i32>} : memref<1x1x4x8x128xf32, #tpu.memory_space<vmem>>, vector<1x1x4x8x128xf32>,
    %c0_25 = arith.constant 0 : index
    %c0_26 = arith.constant 0 : index
    %c0_27 = arith.constant 0 : index
    %c0_28 = arith.constant 0 : index
    %c0_29 = arith.constant 0 : index
    %53 = vector.load %arg7[%c0_25, %c0_26, %c0_27, %c0_28, %c0_29] : memref<1x1x4x8x128xf32, #tpu.memory_space<vmem>>, vector<1x1x4x8x128xf32>
    %54 = vector.shape_cast %53 : vector<1x1x4x8x128xf32> to vector<4x8x128xf32>
    %55 = arith.addf %54, %46 : vector<4x8x128xf32>
    %c0_30 = arith.constant 0 : index
    %c0_31 = arith.constant 0 : index
    %c0_32 = arith.constant 0 : index
    %c0_33 = arith.constant 0 : index
    %c0_34 = arith.constant 0 : index
    %56 = vector.load %arg7[%c0_30, %c0_31, %c0_32, %c0_33, %c0_34] : memref<1x1x4x8x128xf32, #tpu.memory_space<vmem>>, vector<1x1x4x8x128xf32>
    %57 = vector.shape_cast %56 : vector<1x1x4x8x128xf32> to vector<4x8x128xf32>
    %58 = vector.shape_cast %55 : vector<4x8x128xf32> to vector<1x1x4x8x128xf32>
    tpu.vector_store %arg7[%c0_30, %c0_31, %c0_32, %c0_33, %c0_34], %58 {strides = array<i32>} : memref<1x1x4x8x128xf32, #tpu.memory_space<vmem>>, vector<1x1x4x8x128xf32>,
    return
  }
  func.func @transform_0(%arg0: i32, %arg1: i32, %arg2: i32) -> (i32, i32, i32, i32) {
    %c1_i32 = arith.constant 1 : i32
    %0 = arith.muli %arg1, %c1_i32 : i32
    %1 = arith.addi %0, %arg2 : i32
    %c0_i32 = arith.constant 0 : i32
    %c0_i32_0 = arith.constant 0 : i32
    %c0_i32_1 = arith.constant 0 : i32
    return %arg0, %c0_i32, %1, %c0_i32_0 : i32, i32, i32, i32
  }
  func.func @transform_1(%arg0: i32, %arg1: i32, %arg2: i32) -> (i32, i32, i32, i32) {
    %c1_i32 = arith.constant 1 : i32
    %0 = arith.muli %arg1, %c1_i32 : i32
    %1 = arith.addi %0, %arg2 : i32
    %c0_i32 = arith.constant 0 : i32
    %c0_i32_0 = arith.constant 0 : i32
    %c0_i32_1 = arith.constant 0 : i32
    return %arg0, %c0_i32, %1, %c0_i32_0 : i32, i32, i32, i32
  }
  func.func @transform_2(%arg0: i32, %arg1: i32, %arg2: i32) -> (i32, i32, i32, i32) {
    %c1_i32 = arith.constant 1 : i32
    %0 = arith.muli %arg1, %c1_i32 : i32
    %1 = arith.addi %0, %arg2 : i32
    %c0_i32 = arith.constant 0 : i32
    %c0_i32_0 = arith.constant 0 : i32
    %c0_i32_1 = arith.constant 0 : i32
    return %arg0, %c0_i32, %1, %c0_i32_0 : i32, i32, i32, i32
  }
  func.func @transform_3(%arg0: i32, %arg1: i32, %arg2: i32) -> (i32, i32, i32, i32, i32) {
    %c0_i32 = arith.constant 0 : i32
    %c0_i32_0 = arith.constant 0 : i32
    %c0_i32_1 = arith.constant 0 : i32
    %c0_i32_2 = arith.constant 0 : i32
    return %arg0, %arg1, %c0_i32, %c0_i32_0, %c0_i32_1 : i32, i32, i32, i32, i32
  }
  func.func @transform_4(%arg0: i32, %arg1: i32, %arg2: i32) -> (i32, i32, i32, i32, i32) {
    %c0_i32 = arith.constant 0 : i32
    %c0_i32_0 = arith.constant 0 : i32
    %c0_i32_1 = arith.constant 0 : i32
    %c0_i32_2 = arith.constant 0 : i32
    return %arg0, %arg1, %c0_i32, %c0_i32_0, %c0_i32_1 : i32, i32, i32, i32, i32
  }
}

</mosaic_0001>

<llo_original>
// kernel: tc_loss_pallas.1
$region0: #{tc_loss_pallas.1}
  #allocation0 [shape = 'u32[]', space=smem, size = 0x4, offset = 0x4, fixed_abs, tag = 'smem constant byte address 0x4 - core index']
  #allocation1 [shape = 'u32[144,128]{1,0:T(1,128)}', space=vmem, size = 0x12000, scoped, tag = 'internal scratch']
  %s0 = inlined_call_operand.vmem [shape: bf16[2,4,32,128], index: 0, kind: input, shape index: {}]
  %s1 = inlined_call_operand.vmem [shape: bf16[2,4,32,128], index: 1, kind: input, shape index: {}]
  %s2 = inlined_call_operand.vmem [shape: bf16[2,2,32,128], index: 2, kind: input, shape index: {}]
  %s3 = inlined_call_operand.vmem [shape: f32[2,2,4,8,128], index: 3, kind: output, shape index: {0}]
  %s4 = inlined_call_operand.vmem [shape: f32[2,2,4,8,128], index: 4, kind: output, shape index: {1}]
  %5 = xla_tuple %s3, %s4
  %s6 = sld [smem:[#allocation0]]
  $region180: #{tc_loss_pallas.1} parent=0
    _
  %s8 = ssub.s32 1, %s6
  %s9 = scalar_select 0, %s8, %s6
  $region1: #{tc_loss_pallas.1} parent=0
    #allocation2 [shape = 'u8[32768]{0}', space=vmem, size = 0x8000, scoped, tag = 'input window, operand 0']
    #allocation3 [shape = 'u8[32768]{0}', space=vmem, size = 0x8000, scoped, tag = 'input window, operand 1']
    #allocation4 [shape = 'u8[16384]{0}', space=vmem, size = 0x4000, scoped, tag = 'input window, operand 2']
    loop: start=0, step=1, limit=6
    $region2: #{tc_loss_pallas.1} parent=1 // loop_pre_header
      _
    $region3: #{tc_loss_pallas.1} parent=1 // loop_header
      %s11 = sphi 0, %s15
      %p12 = scmp.ge.s32.totalorder %s11, 6
      %s18 = sphi 0, %s37
      %s19 = sphi 0, %s33
      %s20 = sphi 0, %s29
      %s21 = sphi 0, %s18
      %s22 = sphi 0, %s19
      %s23 = sphi 0, %s20
      %s24 = sphi 0, %s21
      %s25 = sphi 0, %s22
      %s26 = sphi 0, %s23
      %s44 = sphi 0, %s46
      %s47 = sphi 0, %s44
      %s48 = sphi 0, %s47
      %s64 = sphi 0, %s48
      %s74 = sphi 0, %s76
      %s77 = sphi 0, %s74
      %s78 = sphi 0, %s77
      %s94 = sphi 0, %s78
      %s104 = sphi 0, %s106
      %s107 = sphi 0, %s104
      %s108 = sphi 0, %s107
      %s124 = sphi 0, %s108
      %s132 = sphi 0, %s134
      %s135 = sphi 0, %s132
      %s136 = sphi 0, %s135
      %s152 = sphi 0, %s136
      %s160 = sphi 0, %s162
      %s163 = sphi 0, %s160
      %s164 = sphi 0, %s163
      %s180 = sphi 0, %s164
    $region4: #{tc_loss_pallas.1} parent=1 // loop_header_branch
      %14 = sbr.rel (%p12) target = $region8
    $region5: #{tc_loss_pallas.1} parent=1 // loop_body
      %s16 = ssub.s32 %s11, 1
      %s17 = ssub.s32 %s11, 2
      %s27 = sadd.s32 1, %s20
      %p28 = scmp.ge.s32.totalorder %s27, 1
      %s29 = scalar_select %p28, 0, %s27
      %s30 = sadd.s32 1, %s19
      %s31 = scalar_select %p28, %s30, %s19
      %p32 = scmp.ge.s32.totalorder %s31, 2
      %s33 = scalar_select %p32, 0, %s31
      %s34 = sadd.s32 1, %s18
      %s35 = scalar_select %p32, %s34, %s18
      %p36 = scmp.ge.s32.totalorder %s35, 2
      %s37 = scalar_select %p36, 0, %s35
      %s38 = sadd.s32 %s19, %s20
      %s39 = sadd.s32 %s33, %s29
      %s40 = ssub.s32 %s18, %s37
      %s41 = ssub.s32 %s38, %s39
      %s42 = sor.u32 %s40, %s41
      %p43 = scmp.eq.s32.totalorder %s42, 0
      %s45 = sadd.s32 %s44, 1
      %s46 = scalar_select %p43, %s44, %s45
      %p49 = pneg %p43
      %p50 = scmp.eq.s32.totalorder %s11, 3
      %p51 = por %p49, %p50
      %p52 = scmp.ne.s32.totalorder %s44, %s47
      %p53 = scmp.eq.s32.totalorder %s11, 0
      %p54 = por %p52, %p53
      %p55 = scmp.ne.s32.totalorder %s44, %s47
      %p56 = scmp.eq.s32.totalorder %s16, 3
      %p57 = por %p55, %p56
      %p58 = scmp.ne.s32.totalorder %s47, %s48
      %p59 = scmp.eq.s32.totalorder %s16, 0
      %p60 = por %p58, %p59
      %p61 = scmp.ne.s32.totalorder %s47, %s48
      %p62 = scmp.eq.s32.totalorder %s17, 3
      %p63 = por %p61, %p62
      %p65 = scmp.ne.s32.totalorder %s48, %s64
      %p66 = scmp.eq.s32.totalorder %s17, 0
      %p67 = por %p65, %p66
      %s68 = sadd.s32 %s19, %s20
      %s69 = sadd.s32 %s33, %s29
      %s70 = ssub.s32 %s18, %s37
      %s71 = ssub.s32 %s68, %s69
      %s72 = sor.u32 %s70, %s71
      %p73 = scmp.eq.s32.totalorder %s72, 0
      %s75 = sadd.s32 %s74, 1
      %s76 = scalar_select %p73, %s74, %s75
      %p79 = pneg %p73
      %p80 = scmp.eq.s32.totalorder %s11, 3
      %p81 = por %p79, %p80
      %p82 = scmp.ne.s32.totalorder %s74, %s77
      %p83 = scmp.eq.s32.totalorder %s11, 0
      %p84 = por %p82, %p83
      %p85 = scmp.ne.s32.totalorder %s74, %s77
      %p86 = scmp.eq.s32.totalorder %s16, 3
      %p87 = por %p85, %p86
      %p88 = scmp.ne.s32.totalorder %s77, %s78
      %p89 = scmp.eq.s32.totalorder %s16, 0
      %p90 = por %p88, %p89
      %p91 = scmp.ne.s32.totalorder %s77, %s78
      %p92 = scmp.eq.s32.totalorder %s17, 3
      %p93 = por %p91, %p92
      %p95 = scmp.ne.s32.totalorder %s78, %s94
      %p96 = scmp.eq.s32.totalorder %s17, 0
      %p97 = por %p95, %p96
      %s98 = sadd.s32 %s19, %s20
      %s99 = sadd.s32 %s33, %s29
      %s100 = ssub.s32 %s18, %s37
      %s101 = ssub.s32 %s98, %s99
      %s102 = sor.u32 %s100, %s101
      %p103 = scmp.eq.s32.totalorder %s102, 0
      %s105 = sadd.s32 %s104, 1
      %s106 = scalar_select %p103, %s104, %s105
      %p109 = pneg %p103
      %p110 = scmp.eq.s32.totalorder %s11, 3
      %p111 = por %p109, %p110
      %p112 = scmp.ne.s32.totalorder %s104, %s107
      %p113 = scmp.eq.s32.totalorder %s11, 0
      %p114 = por %p112, %p113
      %p115 = scmp.ne.s32.totalorder %s104, %s107
      %p116 = scmp.eq.s32.totalorder %s16, 3
      %p117 = por %p115, %p116
      %p118 = scmp.ne.s32.totalorder %s107, %s108
      %p119 = scmp.eq.s32.totalorder %s16, 0
      %p120 = por %p118, %p119
      %p121 = scmp.ne.s32.totalorder %s107, %s108
      %p122 = scmp.eq.s32.totalorder %s17, 3
      %p123 = por %p121, %p122
      %p125 = scmp.ne.s32.totalorder %s108, %s124
      %p126 = scmp.eq.s32.totalorder %s17, 0
      %p127 = por %p125, %p126
      %s128 = ssub.s32 %s18, %s37
      %s129 = ssub.s32 %s19, %s33
      %s130 = sor.u32 %s128, %s129
      %p131 = scmp.eq.s32.totalorder %s130, 0
      %s133 = sadd.s32 %s132, 1
      %s134 = scalar_select %p131, %s132, %s133
      %p137 = pneg %p131
      %p138 = scmp.eq.s32.totalorder %s11, 3
      %p139 = por %p137, %p138
      %p140 = scmp.ne.s32.totalorder %s132, %s135
      %p141 = scmp.eq.s32.totalorder %s11, 0
      %p142 = por %p140, %p141
      %p143 = scmp.ne.s32.totalorder %s132, %s135
      %p144 = scmp.eq.s32.totalorder %s16, 3
      %p145 = por %p143, %p144
      %p146 = scmp.ne.s32.totalorder %s135, %s136
      %p147 = scmp.eq.s32.totalorder %s16, 0
      %p148 = por %p146, %p147
      %p149 = scmp.ne.s32.totalorder %s135, %s136
      %p150 = scmp.eq.s32.totalorder %s17, 3
      %p151 = por %p149, %p150
      %p153 = scmp.ne.s32.totalorder %s136, %s152
      %p154 = scmp.eq.s32.totalorder %s17, 0
      %p155 = por %p153, %p154
      %s156 = ssub.s32 %s18, %s37
      %s157 = ssub.s32 %s19, %s33
      %s158 = sor.u32 %s156, %s157
      %p159 = scmp.eq.s32.totalorder %s158, 0
      %s161 = sadd.s32 %s160, 1
      %s162 = scalar_select %p159, %s160, %s161
      %p165 = pneg %p159
      %p166 = scmp.eq.s32.totalorder %s11, 3
      %p167 = por %p165, %p166
      %p168 = scmp.ne.s32.totalorder %s160, %s163
      %p169 = scmp.eq.s32.totalorder %s11, 0
      %p170 = por %p168, %p169
      %p171 = scmp.ne.s32.totalorder %s160, %s163
      %p172 = scmp.eq.s32.totalorder %s16, 3
      %p173 = por %p171, %p172
      %p174 = scmp.ne.s32.totalorder %s163, %s164
      %p175 = scmp.eq.s32.totalorder %s16, 0
      %p176 = por %p174, %p175
      %p177 = scmp.ne.s32.totalorder %s163, %s164
      %p178 = scmp.eq.s32.totalorder %s17, 3
      %p179 = por %p177, %p178
      %p181 = scmp.ne.s32.totalorder %s164, %s180
      %p182 = scmp.eq.s32.totalorder %s17, 0
      %p183 = por %p181, %p182
      %p184 = scmp.le.s32.totalorder 1, %s11
      %p185 = scmp.lt.s32.totalorder %s11, 5
      %p186 = pnand %p184, %p185
      %p187 = pneg %p186
      // Predicated region
      $region9: #{tc_loss_pallas.1} parent=5 // pred_check
        _
      $region10: #{tc_loss_pallas.1} parent=5 // pred_check_branch
        %189 = sbr.rel (%p186) target = $region12
      $region11: #{tc_loss_pallas.1} parent=5 // pred_region
        %s190 = ssub.s32 %s11, 1
      $region12: #{tc_loss_pallas.1} parent=5 // pred_fallthru
        _
      %p191 = scmp.lt.s32.totalorder %s11, 4
      // Predicated region
      $region13: #{tc_loss_pallas.1} parent=5 // pred_check
        %p192 = pneg %p191
      $region14: #{tc_loss_pallas.1} parent=5 // pred_check_branch
        %194 = sbr.rel (%p192) target = $region16
      $region15: #{tc_loss_pallas.1} parent=5 // pred_region
        // Predicated region
        $region17: #{tc_loss_pallas.1} parent=15 // pred_check
          %p195 = pneg %p54
        $region18: #{tc_loss_pallas.1} parent=15 // pred_check_branch
          %197 = sbr.rel (%p195) target = $region20
        $region19: #{tc_loss_pallas.1} parent=15 // pred_region
          %s198 = sand.u32 %s44, 1
          %s199 = sand.u32 %s44, 1
          %s200 = smul.addr %s199, 32
          %s201 = scalar_lea.vmem [#allocation2], %s200
          %s202 = sadd.s32 %s19, %s20
          %s203 = smul.u32 2, %s202
          %s204 = smul.addr %s18, 16
          %s205 = sadd.s32 %s203, %s204
          %s206 = smul.addr %s205, 4
          %s207 = scalar_lea.vmem %s0, %s206
          // Predicated region
          $region21: #{tc_loss_pallas.1} parent=19 // pred_check
            _
          $region22: #{tc_loss_pallas.1} parent=19 // pred_check_branch
            %209 = sbr.rel (0) target = $region24
          $region23: #{tc_loss_pallas.1} parent=19 // pred_region
            // Predicated region
            $region25: #{tc_loss_pallas.1} parent=23 // pred_check
              _
            $region26: #{tc_loss_pallas.1} parent=23 // pred_check_branch
              %211 = sbr.rel target = $region28
            $region27: #{tc_loss_pallas.1} parent=23 // pred_region
              // Predicated region
              $region40: #{tc_loss_pallas.1} parent=27 // pred_check
                _
              $region41: #{tc_loss_pallas.1} parent=27 // pred_check_branch
                %240 = sbr.rel (0) target = $region43
              $region42: #{tc_loss_pallas.1} parent=27 // pred_region
                loop: start=0, step=1, limit=1
                $region44: #{tc_loss_pallas.1} parent=42 // loop_pre_header
                  _
                $region45: #{tc_loss_pallas.1} parent=42 // loop_header
                  %s242 = sphi 0, %s246
                  %p243 = scmp.ge.s32.totalorder %s242, 1
                  %s247 = sphi %s207, %s207
                  %s248 = sphi %s201, %s201
                $region46: #{tc_loss_pallas.1} parent=42 // loop_header_branch
                  %245 = sbr.rel (%p243) target = $region50
                $region47: #{tc_loss_pallas.1} parent=42 // loop_body
                  _
                $region48: #{tc_loss_pallas.1} parent=42 // loop_footer
                  %s246 = sadd.s32 1, %s242
                $region49: #{tc_loss_pallas.1} parent=42 // loop_footer_branch
                  %241 = sbr.rel target = $region45
                $region50: #{tc_loss_pallas.1} parent=42 // loop_exit
                  _
                loop: start=0, step=1, limit=1
                $region51: #{tc_loss_pallas.1} parent=42 // loop_pre_header
                  _
                $region52: #{tc_loss_pallas.1} parent=42 // loop_header
                  %s251 = sphi 0, %s255
                  %p252 = scmp.ge.s32.totalorder %s251, 1
                  %s256 = sphi %s207, %s207
                  %s257 = sphi %s201, %s201
                $region53: #{tc_loss_pallas.1} parent=42 // loop_header_branch
                  %254 = sbr.rel (%p252) target = $region57
                $region54: #{tc_loss_pallas.1} parent=42 // loop_body
                  %v258 = vld [vmem:[%s256] sm:$0xf]
                  %259 = vst [vmem:[%s257] sm:$0xf] %v258
                  %v260 = vld [vmem:[%s256 + $0x4] sm:$0xf]
                  %261 = vst [vmem:[%s257 + $0x4] sm:$0xf] %v260
                  %v262 = vld [vmem:[%s256 + $0x10] sm:$0xf]
                  %263 = vst [vmem:[%s257 + $0x8] sm:$0xf] %v262
                  %v264 = vld [vmem:[%s256 + $0x14] sm:$0xf]
                  %265 = vst [vmem:[%s257 + $0xc] sm:$0xf] %v264
                  %v266 = vld [vmem:[%s256 + $0x20] sm:$0xf]
                  %267 = vst [vmem:[%s257 + $0x10] sm:$0xf] %v266
                  %v268 = vld [vmem:[%s256 + $0x24] sm:$0xf]
                  %269 = vst [vmem:[%s257 + $0x14] sm:$0xf] %v268
                  %v270 = vld [vmem:[%s256 + $0x30] sm:$0xf]
                  %271 = vst [vmem:[%s257 + $0x18] sm:$0xf] %v270
                  %v272 = vld [vmem:[%s256 + $0x34] sm:$0xf]
                  %273 = vst [vmem:[%s257 + $0x1c] sm:$0xf] %v272
                $region55: #{tc_loss_pallas.1} parent=42 // loop_footer
                  %s255 = sadd.s32 1, %s251
                $region56: #{tc_loss_pallas.1} parent=42 // loop_footer_branch
                  %250 = sbr.rel target = $region52
                $region57: #{tc_loss_pallas.1} parent=42 // loop_exit
                  _
              $region43: #{tc_loss_pallas.1} parent=27 // pred_fallthru
                _
            $region28: #{tc_loss_pallas.1} parent=23 // pred_fallthru
              _
            // Predicated region
            $region29: #{tc_loss_pallas.1} parent=23 // pred_check
              _
            $region30: #{tc_loss_pallas.1} parent=23 // pred_check_branch
              %213 = sbr.rel (0) target = $region32
            $region31: #{tc_loss_pallas.1} parent=23 // pred_region
              loop: start=0, step=1, limit=1
              $region33: #{tc_loss_pallas.1} parent=31 // loop_pre_header
                _
              $region34: #{tc_loss_pallas.1} parent=31 // loop_header
                %s216 = sphi 0, %s220
                %p217 = scmp.ge.s32.totalorder %s216, 1
                %s221 = sphi %s207, %s207
                %s222 = sphi %s201, %s201
              $region35: #{tc_loss_pallas.1} parent=31 // loop_header_branch
                %219 = sbr.rel (%p217) target = $region39
              $region36: #{tc_loss_pallas.1} parent=31 // loop_body
                %v223 = vld [vmem:[%s221] sm:$0xf]
                %224 = vst [vmem:[%s222] sm:$0xf] %v223
                %v225 = vld [vmem:[%s221 + $0x4] sm:$0xf]
                %226 = vst [vmem:[%s222 + $0x4] sm:$0xf] %v225
                %v227 = vld [vmem:[%s221 + $0x10] sm:$0xf]
                %228 = vst [vmem:[%s222 + $0x8] sm:$0xf] %v227
                %v229 = vld [vmem:[%s221 + $0x14] sm:$0xf]
                %230 = vst [vmem:[%s222 + $0xc] sm:$0xf] %v229
                %v231 = vld [vmem:[%s221 + $0x20] sm:$0xf]
                %232 = vst [vmem:[%s222 + $0x10] sm:$0xf] %v231
                %v233 = vld [vmem:[%s221 + $0x24] sm:$0xf]
                %234 = vst [vmem:[%s222 + $0x14] sm:$0xf] %v233
                %v235 = vld [vmem:[%s221 + $0x30] sm:$0xf]
                %236 = vst [vmem:[%s222 + $0x18] sm:$0xf] %v235
                %v237 = vld [vmem:[%s221 + $0x34] sm:$0xf]
                %238 = vst [vmem:[%s222 + $0x1c] sm:$0xf] %v237
              $region37: #{tc_loss_pallas.1} parent=31 // loop_footer
                %s220 = sadd.s32 1, %s216
              $region38: #{tc_loss_pallas.1} parent=31 // loop_footer_branch
                %215 = sbr.rel target = $region34
              $region39: #{tc_loss_pallas.1} parent=31 // loop_exit
                _
            $region32: #{tc_loss_pallas.1} parent=23 // pred_fallthru
              _
          $region24: #{tc_loss_pallas.1} parent=19 // pred_fallthru
            _
          %274 = vnop
        $region20: #{tc_loss_pallas.1} parent=15 // pred_fallthru
          _
        // Predicated region
        $region58: #{tc_loss_pallas.1} parent=15 // pred_check
          %p275 = pneg %p84
        $region59: #{tc_loss_pallas.1} parent=15 // pred_check_branch
          %277 = sbr.rel (%p275) target = $region61
        $region60: #{tc_loss_pallas.1} parent=15 // pred_region
          %s278 = sand.u32 %s74, 1
          %s279 = sand.u32 %s74, 1
          %s280 = smul.addr %s279, 32
          %s281 = scalar_lea.vmem [#allocation3], %s280
          %s282 = sadd.s32 %s19, %s20
          %s283 = smul.u32 2, %s282
          %s284 = smul.addr %s18, 16
          %s285 = sadd.s32 %s283, %s284
          %s286 = smul.addr %s285, 4
          %s287 = scalar_lea.vmem %s1, %s286
          // Predicated region
          $region62: #{tc_loss_pallas.1} parent=60 // pred_check
            _
          $region63: #{tc_loss_pallas.1} parent=60 // pred_check_branch
            %289 = sbr.rel (0) target = $region65
          $region64: #{tc_loss_pallas.1} parent=60 // pred_region
            // Predicated region
            $region66: #{tc_loss_pallas.1} parent=64 // pred_check
              _
            $region67: #{tc_loss_pallas.1} parent=64 // pred_check_branch
              %291 = sbr.rel target = $region69
            $region68: #{tc_loss_pallas.1} parent=64 // pred_region
              // Predicated region
              $region81: #{tc_loss_pallas.1} parent=68 // pred_check
                _
              $region82: #{tc_loss_pallas.1} parent=68 // pred_check_branch
                %320 = sbr.rel (0) target = $region84
              $region83: #{tc_loss_pallas.1} parent=68 // pred_region
                loop: start=0, step=1, limit=1
                $region85: #{tc_loss_pallas.1} parent=83 // loop_pre_header
                  _
                $region86: #{tc_loss_pallas.1} parent=83 // loop_header
                  %s322 = sphi 0, %s326
                  %p323 = scmp.ge.s32.totalorder %s322, 1
                  %s327 = sphi %s287, %s287
                  %s328 = sphi %s281, %s281
                $region87: #{tc_loss_pallas.1} parent=83 // loop_header_branch
                  %325 = sbr.rel (%p323) target = $region91
                $region88: #{tc_loss_pallas.1} parent=83 // loop_body
                  _
                $region89: #{tc_loss_pallas.1} parent=83 // loop_footer
                  %s326 = sadd.s32 1, %s322
                $region90: #{tc_loss_pallas.1} parent=83 // loop_footer_branch
                  %321 = sbr.rel target = $region86
                $region91: #{tc_loss_pallas.1} parent=83 // loop_exit
                  _
                loop: start=0, step=1, limit=1
                $region92: #{tc_loss_pallas.1} parent=83 // loop_pre_header
                  _
                $region93: #{tc_loss_pallas.1} parent=83 // loop_header
                  %s331 = sphi 0, %s335
                  %p332 = scmp.ge.s32.totalorder %s331, 1
                  %s336 = sphi %s287, %s287
                  %s337 = sphi %s281, %s281
                $region94: #{tc_loss_pallas.1} parent=83 // loop_header_branch
                  %334 = sbr.rel (%p332) target = $region98
                $region95: #{tc_loss_pallas.1} parent=83 // loop_body
                  %v338 = vld [vmem:[%s336] sm:$0xf]
                  %339 = vst [vmem:[%s337] sm:$0xf] %v338
                  %v340 = vld [vmem:[%s336 + $0x4] sm:$0xf]
                  %341 = vst [vmem:[%s337 + $0x4] sm:$0xf] %v340
                  %v342 = vld [vmem:[%s336 + $0x10] sm:$0xf]
                  %343 = vst [vmem:[%s337 + $0x8] sm:$0xf] %v342
                  %v344 = vld [vmem:[%s336 + $0x14] sm:$0xf]
                  %345 = vst [vmem:[%s337 + $0xc] sm:$0xf] %v344
                  %v346 = vld [vmem:[%s336 + $0x20] sm:$0xf]
                  %347 = vst [vmem:[%s337 + $0x10] sm:$0xf] %v346
                  %v348 = vld [vmem:[%s336 + $0x24] sm:$0xf]
                  %349 = vst [vmem:[%s337 + $0x14] sm:$0xf] %v348
                  %v350 = vld [vmem:[%s336 + $0x30] sm:$0xf]
                  %351 = vst [vmem:[%s337 + $0x18] sm:$0xf] %v350
                  %v352 = vld [vmem:[%s336 + $0x34] sm:$0xf]
                  %353 = vst [vmem:[%s337 + $0x1c] sm:$0xf] %v352
                $region96: #{tc_loss_pallas.1} parent=83 // loop_footer
                  %s335 = sadd.s32 1, %s331
                $region97: #{tc_loss_pallas.1} parent=83 // loop_footer_branch
                  %330 = sbr.rel target = $region93
                $region98: #{tc_loss_pallas.1} parent=83 // loop_exit
                  _
              $region84: #{tc_loss_pallas.1} parent=68 // pred_fallthru
                _
            $region69: #{tc_loss_pallas.1} parent=64 // pred_fallthru
              _
            // Predicated region
            $region70: #{tc_loss_pallas.1} parent=64 // pred_check
              _
            $region71: #{tc_loss_pallas.1} parent=64 // pred_check_branch
              %293 = sbr.rel (0) target = $region73
            $region72: #{tc_loss_pallas.1} parent=64 // pred_region
              loop: start=0, step=1, limit=1
              $region74: #{tc_loss_pallas.1} parent=72 // loop_pre_header
                _
              $region75: #{tc_loss_pallas.1} parent=72 // loop_header
                %s296 = sphi 0, %s300
                %p297 = scmp.ge.s32.totalorder %s296, 1
                %s301 = sphi %s287, %s287
                %s302 = sphi %s281, %s281
              $region76: #{tc_loss_pallas.1} parent=72 // loop_header_branch
                %299 = sbr.rel (%p297) target = $region80
              $region77: #{tc_loss_pallas.1} parent=72 // loop_body
                %v303 = vld [vmem:[%s301] sm:$0xf]
                %304 = vst [vmem:[%s302] sm:$0xf] %v303
                %v305 = vld [vmem:[%s301 + $0x4] sm:$0xf]
                %306 = vst [vmem:[%s302 + $0x4] sm:$0xf] %v305
                %v307 = vld [vmem:[%s301 + $0x10] sm:$0xf]
                %308 = vst [vmem:[%s302 + $0x8] sm:$0xf] %v307
                %v309 = vld [vmem:[%s301 + $0x14] sm:$0xf]
                %310 = vst [vmem:[%s302 + $0xc] sm:$0xf] %v309
                %v311 = vld [vmem:[%s301 + $0x20] sm:$0xf]
                %312 = vst [vmem:[%s302 + $0x10] sm:$0xf] %v311
                %v313 = vld [vmem:[%s301 + $0x24] sm:$0xf]
                %314 = vst [vmem:[%s302 + $0x14] sm:$0xf] %v313
                %v315 = vld [vmem:[%s301 + $0x30] sm:$0xf]
                %316 = vst [vmem:[%s302 + $0x18] sm:$0xf] %v315
                %v317 = vld [vmem:[%s301 + $0x34] sm:$0xf]
                %318 = vst [vmem:[%s302 + $0x1c] sm:$0xf] %v317
              $region78: #{tc_loss_pallas.1} parent=72 // loop_footer
                %s300 = sadd.s32 1, %s296
              $region79: #{tc_loss_pallas.1} parent=72 // loop_footer_branch
                %295 = sbr.rel target = $region75
              $region80: #{tc_loss_pallas.1} parent=72 // loop_exit
                _
            $region73: #{tc_loss_pallas.1} parent=64 // pred_fallthru
              _
          $region65: #{tc_loss_pallas.1} parent=60 // pred_fallthru
            _
          %354 = vnop
        $region61: #{tc_loss_pallas.1} parent=15 // pred_fallthru
          _
        // Predicated region
        $region99: #{tc_loss_pallas.1} parent=15 // pred_check
          %p355 = pneg %p114
        $region100: #{tc_loss_pallas.1} parent=15 // pred_check_branch
          %357 = sbr.rel (%p355) target = $region102
        $region101: #{tc_loss_pallas.1} parent=15 // pred_region
          %s358 = sand.u32 %s104, 1
          %s359 = sand.u32 %s104, 1
          %s360 = smul.addr %s359, 16
          %s361 = scalar_lea.vmem [#allocation4], %s360
          %s362 = sadd.s32 %s19, %s20
          %s363 = smul.u32 2, %s362
          %s364 = smul.addr %s18, 8
          %s365 = sadd.s32 %s363, %s364
          %s366 = smul.addr %s365, 4
          %s367 = scalar_lea.vmem %s2, %s366
          // Predicated region
          $region103: #{tc_loss_pallas.1} parent=101 // pred_check
            _
          $region104: #{tc_loss_pallas.1} parent=101 // pred_check_branch
            %369 = sbr.rel (0) target = $region106
          $region105: #{tc_loss_pallas.1} parent=101 // pred_region
            // Predicated region
            $region107: #{tc_loss_pallas.1} parent=105 // pred_check
              _
            $region108: #{tc_loss_pallas.1} parent=105 // pred_check_branch
              %371 = sbr.rel target = $region110
            $region109: #{tc_loss_pallas.1} parent=105 // pred_region
              // Predicated region
              $region122: #{tc_loss_pallas.1} parent=109 // pred_check
                _
              $region123: #{tc_loss_pallas.1} parent=109 // pred_check_branch
                %392 = sbr.rel (0) target = $region125
              $region124: #{tc_loss_pallas.1} parent=109 // pred_region
                loop: start=0, step=1, limit=1
                $region126: #{tc_loss_pallas.1} parent=124 // loop_pre_header
                  _
                $region127: #{tc_loss_pallas.1} parent=124 // loop_header
                  %s394 = sphi 0, %s398
                  %p395 = scmp.ge.s32.totalorder %s394, 1
                  %s399 = sphi %s367, %s367
                  %s400 = sphi %s361, %s361
                $region128: #{tc_loss_pallas.1} parent=124 // loop_header_branch
                  %397 = sbr.rel (%p395) target = $region132
                $region129: #{tc_loss_pallas.1} parent=124 // loop_body
                  _
                $region130: #{tc_loss_pallas.1} parent=124 // loop_footer
                  %s398 = sadd.s32 1, %s394
                $region131: #{tc_loss_pallas.1} parent=124 // loop_footer_branch
                  %393 = sbr.rel target = $region127
                $region132: #{tc_loss_pallas.1} parent=124 // loop_exit
                  _
                loop: start=0, step=1, limit=1
                $region133: #{tc_loss_pallas.1} parent=124 // loop_pre_header
                  _
                $region134: #{tc_loss_pallas.1} parent=124 // loop_header
                  %s403 = sphi 0, %s407
                  %p404 = scmp.ge.s32.totalorder %s403, 1
                  %s408 = sphi %s367, %s367
                  %s409 = sphi %s361, %s361
                $region135: #{tc_loss_pallas.1} parent=124 // loop_header_branch
                  %406 = sbr.rel (%p404) target = $region139
                $region136: #{tc_loss_pallas.1} parent=124 // loop_body
                  %v410 = vld [vmem:[%s408] sm:$0xf]
                  %411 = vst [vmem:[%s409] sm:$0xf] %v410
                  %v412 = vld [vmem:[%s408 + $0x4] sm:$0xf]
                  %413 = vst [vmem:[%s409 + $0x4] sm:$0xf] %v412
                  %v414 = vld [vmem:[%s408 + $0x10] sm:$0xf]
                  %415 = vst [vmem:[%s409 + $0x8] sm:$0xf] %v414
                  %v416 = vld [vmem:[%s408 + $0x14] sm:$0xf]
                  %417 = vst [vmem:[%s409 + $0xc] sm:$0xf] %v416
                $region137: #{tc_loss_pallas.1} parent=124 // loop_footer
                  %s407 = sadd.s32 1, %s403
                $region138: #{tc_loss_pallas.1} parent=124 // loop_footer_branch
                  %402 = sbr.rel target = $region134
                $region139: #{tc_loss_pallas.1} parent=124 // loop_exit
                  _
              $region125: #{tc_loss_pallas.1} parent=109 // pred_fallthru
                _
            $region110: #{tc_loss_pallas.1} parent=105 // pred_fallthru
              _
            // Predicated region
            $region111: #{tc_loss_pallas.1} parent=105 // pred_check
              _
            $region112: #{tc_loss_pallas.1} parent=105 // pred_check_branch
              %373 = sbr.rel (0) target = $region114
            $region113: #{tc_loss_pallas.1} parent=105 // pred_region
              loop: start=0, step=1, limit=1
              $region115: #{tc_loss_pallas.1} parent=113 // loop_pre_header
                _
              $region116: #{tc_loss_pallas.1} parent=113 // loop_header
                %s376 = sphi 0, %s380
                %p377 = scmp.ge.s32.totalorder %s376, 1
                %s381 = sphi %s367, %s367
                %s382 = sphi %s361, %s361
              $region117: #{tc_loss_pallas.1} parent=113 // loop_header_branch
                %379 = sbr.rel (%p377) target = $region121
              $region118: #{tc_loss_pallas.1} parent=113 // loop_body
                %v383 = vld [vmem:[%s381] sm:$0xf]
                %384 = vst [vmem:[%s382] sm:$0xf] %v383
                %v385 = vld [vmem:[%s381 + $0x4] sm:$0xf]
                %386 = vst [vmem:[%s382 + $0x4] sm:$0xf] %v385
                %v387 = vld [vmem:[%s381 + $0x10] sm:$0xf]
                %388 = vst [vmem:[%s382 + $0x8] sm:$0xf] %v387
                %v389 = vld [vmem:[%s381 + $0x14] sm:$0xf]
                %390 = vst [vmem:[%s382 + $0xc] sm:$0xf] %v389
              $region119: #{tc_loss_pallas.1} parent=113 // loop_footer
                %s380 = sadd.s32 1, %s376
              $region120: #{tc_loss_pallas.1} parent=113 // loop_footer_branch
                %375 = sbr.rel target = $region116
              $region121: #{tc_loss_pallas.1} parent=113 // loop_exit
                _
            $region114: #{tc_loss_pallas.1} parent=105 // pred_fallthru
              _
          $region106: #{tc_loss_pallas.1} parent=101 // pred_fallthru
            _
          %418 = vnop
        $region102: #{tc_loss_pallas.1} parent=15 // pred_fallthru
          _
      $region16: #{tc_loss_pallas.1} parent=5 // pred_fallthru
        _
      %p419 = scmp.le.s32.totalorder 1, %s11
      %p420 = scmp.lt.s32.totalorder %s11, 5
      %p421 = pnand %p419, %p420
      %p422 = pneg %p421
      // Predicated region
      $region140: #{tc_loss_pallas.1} parent=5 // pred_check
        _
      $region141: #{tc_loss_pallas.1} parent=5 // pred_check_branch
        %424 = sbr.rel (%p421) target = $region143
      $region142: #{tc_loss_pallas.1} parent=5 // pred_region
        %s425 = ssub.s32 %s11, 1
        %s426 = sand.u32 %s47, 1
        %s427 = sand.u32 %s47, 1
        %s428 = smul.addr %s427, 32
        %s429 = scalar_lea.vmem [#allocation2], %s428
        // Predicated region
        $region144: #{tc_loss_pallas.1} parent=142 // pred_check
          %p430 = pneg %p60
        $region145: #{tc_loss_pallas.1} parent=142 // pred_check_branch
          %432 = sbr.rel (%p430) target = $region147
        $region146: #{tc_loss_pallas.1} parent=142 // pred_region
          _
        $region147: #{tc_loss_pallas.1} parent=142 // pred_fallthru
          _
        %s433 = sand.u32 %s77, 1
        %s434 = sand.u32 %s77, 1
        %s435 = smul.addr %s434, 32
        %s436 = scalar_lea.vmem [#allocation3], %s435
        // Predicated region
        $region148: #{tc_loss_pallas.1} parent=142 // pred_check
          %p437 = pneg %p90
        $region149: #{tc_loss_pallas.1} parent=142 // pred_check_branch
          %439 = sbr.rel (%p437) target = $region151
        $region150: #{tc_loss_pallas.1} parent=142 // pred_region
          _
        $region151: #{tc_loss_pallas.1} parent=142 // pred_fallthru
          _
        %s440 = sand.u32 %s107, 1
        %s441 = sand.u32 %s107, 1
        %s442 = smul.addr %s441, 16
        %s443 = scalar_lea.vmem [#allocation4], %s442
        // Predicated region
        $region152: #{tc_loss_pallas.1} parent=142 // pred_check
          %p444 = pneg %p120
        $region153: #{tc_loss_pallas.1} parent=142 // pred_check_branch
          %446 = sbr.rel (%p444) target = $region155
        $region154: #{tc_loss_pallas.1} parent=142 // pred_region
          _
        $region155: #{tc_loss_pallas.1} parent=142 // pred_fallthru
          _
        %s447 = sand.u32 %s47, 1
        %s448 = sand.u32 %s47, 1
        %s449 = smul.addr %s448, 32
        %s450 = scalar_lea.vmem [#allocation2], %s449
        %p451 = pneg %p60
        %p452 = pneg %p57
        %s453 = sand.u32 %s77, 1
        %s454 = sand.u32 %s77, 1
        %s455 = smul.addr %s454, 32
        %s456 = scalar_lea.vmem [#allocation3], %s455
        %p457 = pneg %p90
        %p458 = pneg %p87
        %s459 = sand.u32 %s107, 1
        %s460 = sand.u32 %s107, 1
        %s461 = smul.addr %s460, 16
        %s462 = scalar_lea.vmem [#allocation4], %s461
        %p463 = pneg %p120
        %p464 = pneg %p117
        %p465 = pneg %p148
        %p466 = pneg %p145
        %p467 = scmp.lt.s32.totalorder %s21, 1
        %s468 = scalar_select %p467, %s21, 1
        %p469 = scmp.lt.s32.totalorder %s22, 1
        %s470 = scalar_select %p469, %s22, 1
        %s471 = smul.addr %s470, 4
        %s472 = smul.addr %s468, 8
        %s473 = sadd.s32 %s471, %s472
        %s474 = smul.addr %s473, 8
        %s475 = scalar_lea.vmem %s3, %s474
        %p476 = pneg %p176
        %p477 = pneg %p173
        %p478 = scmp.lt.s32.totalorder %s21, 1
        %s479 = scalar_select %p478, %s21, 1
        %p480 = scmp.lt.s32.totalorder %s22, 1
        %s481 = scalar_select %p480, %s22, 1
        %s482 = smul.addr %s481, 4
        %s483 = smul.addr %s479, 8
        %s484 = sadd.s32 %s482, %s483
        %s485 = smul.addr %s484, 8
        %s486 = scalar_lea.vmem %s4, %s485
        %s487 = sadd.s32 %s22, %s23
        %s488 = smul.u32 2, %s487
        %s489 = sadd.s32 %s22, %s23
        %s490 = smul.u32 2, %s489
        %s491 = sadd.s32 %s22, %s23
        %s492 = smul.u32 2, %s491
        %p493 = scmp.lt.s32.totalorder %s21, 1
        %s494 = scalar_select %p493, %s21, 1
        %p495 = scmp.lt.s32.totalorder %s22, 1
        %s496 = scalar_select %p495, %s22, 1
        %s497 = smul.addr %s496, 4
        %s498 = smul.addr %s494, 8
        %s499 = sadd.s32 %s497, %s498
        %s500 = smul.addr %s499, 8
        %s501 = scalar_lea.vmem %s3, %s500
        %p502 = scmp.lt.s32.totalorder %s21, 1
        %s503 = scalar_select %p502, %s21, 1
        %p504 = scmp.lt.s32.totalorder %s22, 1
        %s505 = scalar_select %p504, %s22, 1
        %s506 = smul.addr %s505, 4
        %s507 = smul.addr %s503, 8
        %s508 = sadd.s32 %s506, %s507
        %s509 = smul.addr %s508, 8
        %s510 = scalar_lea.vmem %s4, %s509
        %p511 = scmp.eq.s32.totalorder %s23, 0
        // Predicated region
        $region156: #{tc_loss_pallas.1} parent=142 // pred_check
          %p512 = pneg %p511
        $region157: #{tc_loss_pallas.1} parent=142 // pred_check_branch
          %514 = sbr.rel (%p512) target = $region159
        $region158: #{tc_loss_pallas.1} parent=142 // pred_region
          %515 = vst [vmem:[%s501] sm:$0xff] 0.0
          %516 = vst [vmem:[%s501 + $0x8] sm:$0xff] 0.0
          %517 = vst [vmem:[%s501 + $0x10] sm:$0xff] 0.0
          %518 = vst [vmem:[%s501 + $0x18] sm:$0xff] 0.0
          %519 = vst [vmem:[%s510] sm:$0xff] 0.0
          %520 = vst [vmem:[%s510 + $0x8] sm:$0xff] 0.0
          %521 = vst [vmem:[%s510 + $0x10] sm:$0xff] 0.0
          %522 = vst [vmem:[%s510 + $0x18] sm:$0xff] 0.0
        $region159: #{tc_loss_pallas.1} parent=142 // pred_fallthru
          _
        %v523 = vld [vmem:[%s429] sm:$0xf]
        %v524 = vld [vmem:[%s429 + $0x4] sm:$0xf]
        %v525 = vld [vmem:[%s429 + $0x8] sm:$0xf]
        %v526 = vld [vmem:[%s429 + $0xc] sm:$0xf]
        %v527 = vld [vmem:[%s429 + $0x10] sm:$0xf]
        %v528 = vld [vmem:[%s429 + $0x14] sm:$0xf]
        %v529 = vld [vmem:[%s429 + $0x18] sm:$0xf]
        %v530 = vld [vmem:[%s429 + $0x1c] sm:$0xf]
        %v531 = vunpack.c.l.bf16 %v523
        %v532 = vunpack.c.l.bf16 %v524
        %v533 = vunpack.c.l.bf16 %v525
        %v534 = vunpack.c.l.bf16 %v526
        %v535 = vunpack.c.l.bf16 %v527
        %v536 = vunpack.c.l.bf16 %v528
        %v537 = vunpack.c.l.bf16 %v529
        %v538 = vunpack.c.l.bf16 %v530
        %v539 = vld [vmem:[%s436] sm:$0xf]
        %v540 = vld [vmem:[%s436 + $0x4] sm:$0xf]
        %v541 = vld [vmem:[%s436 + $0x8] sm:$0xf]
        %v542 = vld [vmem:[%s436 + $0xc] sm:$0xf]
        %v543 = vld [vmem:[%s436 + $0x10] sm:$0xf]
        %v544 = vld [vmem:[%s436 + $0x14] sm:$0xf]
        %v545 = vld [vmem:[%s436 + $0x18] sm:$0xf]
        %v546 = vld [vmem:[%s436 + $0x1c] sm:$0xf]
        %v547 = vunpack.c.l.bf16 %v539
        %v548 = vunpack.c.l.bf16 %v540
        %v549 = vunpack.c.l.bf16 %v541
        %v550 = vunpack.c.l.bf16 %v542
        %v551 = vunpack.c.l.bf16 %v543
        %v552 = vunpack.c.l.bf16 %v544
        %v553 = vunpack.c.l.bf16 %v545
        %v554 = vunpack.c.l.bf16 %v546
        %v555 = vld [vmem:[%s443] sm:$0xf]
        %v556 = vld [vmem:[%s443 + $0x4] sm:$0xf]
        %v557 = vld [vmem:[%s443 + $0x8] sm:$0xf]
        %v558 = vld [vmem:[%s443 + $0xc] sm:$0xf]
        %v559 = vunpack.c.l.bf16 %v555
        %v560 = vunpack.c.l.bf16 %v556
        %v561 = vunpack.c.l.bf16 %v557
        %v562 = vunpack.c.l.bf16 %v558
        %v563 = vmax.f32 %v531, %v535
        %v564 = vmax.f32 %v533, %v537
        %v565 = vmax.f32 %v563, %v564
        %v566 = vmax.f32 %v532, %v536
        %v567 = vmax.f32 %v534, %v538
        %v568 = vmax.f32 %v566, %v567
        %v569 = vsub.f32 %v531, %v565
        %v570 = vsub.f32 %v532, %v568
        %v571 = vsub.f32 %v533, %v565
        %v572 = vsub.f32 %v534, %v568
        %v573 = vsub.f32 %v535, %v565
        %v574 = vsub.f32 %v536, %v568
        %v575 = vsub.f32 %v537, %v565
        %v576 = vsub.f32 %v538, %v568
        %v577 = vmul.f32 %v569, 1.442695
        %v578 = vpow.pop %v577
        %v579 = vmul.f32 %v570, 1.442695
        %v580 = vpow.pop %v579
        %v581 = vmul.f32 %v571, 1.442695
        %v582 = vpow.pop %v581
        %v583 = vmul.f32 %v572, 1.442695
        %v584 = vpow.pop %v583
        %v585 = vmul.f32 %v573, 1.442695
        %v586 = vpow.pop %v585
        %v587 = vmul.f32 %v574, 1.442695
        %v588 = vpow.pop %v587
        %v589 = vmul.f32 %v575, 1.442695
        %v590 = vpow.pop %v589
        %v591 = vmul.f32 %v576, 1.442695
        %v592 = vpow.pop %v591
        %v593 = vadd.f32 %v578, %v582
        %v594 = vadd.f32 %v593, %v586
        %v595 = vadd.f32 %v594, %v590
        %v596 = vadd.f32 %v580, %v584
        %v597 = vadd.f32 %v596, %v588
        %v598 = vadd.f32 %v597, %v592
        %v599 = vrcp.pop %v595
        %v600 = vrcp.pop %v598
        %v601 = vmul.f32 %v578, %v599
        %v602 = vmul.f32 %v580, %v600
        %v603 = vmul.f32 %v582, %v599
        %v604 = vmul.f32 %v584, %v600
        %v605 = vmul.f32 %v586, %v599
        %v606 = vmul.f32 %v588, %v600
        %v607 = vmul.f32 %v590, %v599
        %v608 = vmul.f32 %v592, %v600
        %v609 = vmax.f32 %v547, %v551
        %v610 = vmax.f32 %v549, %v553
        %v611 = vmax.f32 %v609, %v610
        %v612 = vmax.f32 %v548, %v552
        %v613 = vmax.f32 %v550, %v554
        %v614 = vmax.f32 %v612, %v613
        %v615 = vsub.f32 %v547, %v611
        %v616 = vsub.f32 %v548, %v614
        %v617 = vsub.f32 %v549, %v611
        %v618 = vsub.f32 %v550, %v614
        %v619 = vsub.f32 %v551, %v611
        %v620 = vsub.f32 %v552, %v614
        %v621 = vsub.f32 %v553, %v611
        %v622 = vsub.f32 %v554, %v614
        %v623 = vmul.f32 %v615, 1.442695
        %v624 = vpow.pop %v623
        %v625 = vmul.f32 %v616, 1.442695
        %v626 = vpow.pop %v625
        %v627 = vmul.f32 %v617, 1.442695
        %v628 = vpow.pop %v627
        %v629 = vmul.f32 %v618, 1.442695
        %v630 = vpow.pop %v629
        %v631 = vmul.f32 %v619, 1.442695
        %v632 = vpow.pop %v631
        %v633 = vmul.f32 %v620, 1.442695
        %v634 = vpow.pop %v633
        %v635 = vmul.f32 %v621, 1.442695
        %v636 = vpow.pop %v635
        %v637 = vmul.f32 %v622, 1.442695
        %v638 = vpow.pop %v637
        %v639 = vadd.f32 %v624, %v628
        %v640 = vadd.f32 %v639, %v632
        %v641 = vadd.f32 %v640, %v636
        %v642 = vadd.f32 %v626, %v630
        %v643 = vadd.f32 %v642, %v634
        %v644 = vadd.f32 %v643, %v638
        %v645 = vrcp.pop %v641
        %v646 = vrcp.pop %v644
        %v647 = vmul.f32 %v624, %v645
        %v648 = vmul.f32 %v626, %v646
        %v649 = vmul.f32 %v628, %v645
        %v650 = vmul.f32 %v630, %v646
        %v651 = vmul.f32 %v632, %v645
        %v652 = vmul.f32 %v634, %v646
        %v653 = vmul.f32 %v636, %v645
        %v654 = vmul.f32 %v638, %v646
        %v655 = vmul.f32 %v601, %v559
        %v656 = vmul.f32 %v602, %v560
        %v657 = vmul.f32 %v603, %v559
        %v658 = vmul.f32 %v604, %v560
        %v659 = vmul.f32 %v605, %v559
        %v660 = vmul.f32 %v606, %v560
        %v661 = vmul.f32 %v607, %v559
        %v662 = vmul.f32 %v608, %v560
        %v663 = vmul.f32 %v647, %v561
        %v664 = vmul.f32 %v648, %v562
        %v665 = vmul.f32 %v649, %v561
        %v666 = vmul.f32 %v650, %v562
        %v667 = vmul.f32 %v651, %v561
        %v668 = vmul.f32 %v652, %v562
        %v669 = vmul.f32 %v653, %v561
        %v670 = vmul.f32 %v654, %v562
        %v671 = vmul.f32 %v655, %v663
        %v672 = vmul.f32 %v656, %v664
        %v673 = vmul.f32 %v657, %v665
        %v674 = vmul.f32 %v658, %v666
        %v675 = vmul.f32 %v659, %v667
        %v676 = vmul.f32 %v660, %v668
        %v677 = vmul.f32 %v661, %v669
        %v678 = vmul.f32 %v662, %v670
        %v679 = vadd.f32 %v655, %v663
        %v680 = vadd.f32 %v656, %v664
        %v681 = vadd.f32 %v657, %v665
        %v682 = vadd.f32 %v658, %v666
        %v683 = vadd.f32 %v659, %v667
        %v684 = vadd.f32 %v660, %v668
        %v685 = vadd.f32 %v661, %v669
        %v686 = vadd.f32 %v662, %v670
        %v687 = vsub.f32 %v679, %v671
        %v688 = vsub.f32 %v680, %v672
        %v689 = vsub.f32 %v681, %v673
        %v690 = vsub.f32 %v682, %v674
        %v691 = vsub.f32 %v683, %v675
        %v692 = vsub.f32 %v684, %v676
        %v693 = vsub.f32 %v685, %v677
        %v694 = vsub.f32 %v686, %v678
        %v695 = vadd.f32 %v671, %v672
        %v696 = vadd.f32 %v673, %v674
        %v697 = vadd.f32 %v675, %v676
        %v698 = vadd.f32 %v677, %v678
        %v699 = vadd.f32 %v687, %v688
        %v700 = vadd.f32 %v689, %v690
        %v701 = vadd.f32 %v691, %v692
        %v702 = vadd.f32 %v693, %v694
        %v703 = vld [vmem:[%s501] sm:$0xff]
        %v704 = vld [vmem:[%s501 + $0x8] sm:$0xff]
        %v705 = vld [vmem:[%s501 + $0x10] sm:$0xff]
        %v706 = vld [vmem:[%s501 + $0x18] sm:$0xff]
        %v707 = vadd.f32 %v703, %v695
        %v708 = vadd.f32 %v704, %v696
        %v709 = vadd.f32 %v705, %v697
        %v710 = vadd.f32 %v706, %v698
        %711 = vst [vmem:[%s501] sm:$0xff] %v707
        %712 = vst [vmem:[%s501 + $0x8] sm:$0xff] %v708
        %713 = vst [vmem:[%s501 + $0x10] sm:$0xff] %v709
        %714 = vst [vmem:[%s501 + $0x18] sm:$0xff] %v710
        %v715 = vld [vmem:[%s510] sm:$0xff]
        %v716 = vld [vmem:[%s510 + $0x8] sm:$0xff]
        %v717 = vld [vmem:[%s510 + $0x10] sm:$0xff]
        %v718 = vld [vmem:[%s510 + $0x18] sm:$0xff]
        %v719 = vadd.f32 %v715, %v699
        %v720 = vadd.f32 %v716, %v700
        %v721 = vadd.f32 %v717, %v701
        %v722 = vadd.f32 %v718, %v702
        %723 = vst [vmem:[%s510] sm:$0xff] %v719
        %724 = vst [vmem:[%s510 + $0x8] sm:$0xff] %v720
        %725 = vst [vmem:[%s510 + $0x10] sm:$0xff] %v721
        %726 = vst [vmem:[%s510 + $0x18] sm:$0xff] %v722
        %p727 = scmp.lt.s32.totalorder %s21, 1
        %s728 = scalar_select %p727, %s21, 1
        %p729 = scmp.lt.s32.totalorder %s22, 1
        %s730 = scalar_select %p729, %s22, 1
        %s731 = smul.addr %s730, 4
        %s732 = smul.addr %s728, 8
        %s733 = sadd.s32 %s731, %s732
        %s734 = smul.addr %s733, 8
        %s735 = scalar_lea.vmem %s3, %s734
        %p736 = scmp.lt.s32.totalorder %s21, 1
        %s737 = scalar_select %p736, %s21, 1
        %p738 = scmp.lt.s32.totalorder %s22, 1
        %s739 = scalar_select %p738, %s22, 1
        %s740 = smul.addr %s739, 4
        %s741 = smul.addr %s737, 8
        %s742 = sadd.s32 %s740, %s741
        %s743 = smul.addr %s742, 8
        %s744 = scalar_lea.vmem %s4, %s743
        // Predicated region
        $region160: #{tc_loss_pallas.1} parent=142 // pred_check
          %p745 = pneg %p145
        $region161: #{tc_loss_pallas.1} parent=142 // pred_check_branch
          %747 = sbr.rel (%p745) target = $region163
        $region162: #{tc_loss_pallas.1} parent=142 // pred_region
          _
        $region163: #{tc_loss_pallas.1} parent=142 // pred_fallthru
          _
        // Predicated region
        $region164: #{tc_loss_pallas.1} parent=142 // pred_check
          %p748 = pneg %p173
        $region165: #{tc_loss_pallas.1} parent=142 // pred_check_branch
          %750 = sbr.rel (%p748) target = $region167
        $region166: #{tc_loss_pallas.1} parent=142 // pred_region
          _
        $region167: #{tc_loss_pallas.1} parent=142 // pred_fallthru
          _
      $region143: #{tc_loss_pallas.1} parent=5 // pred_fallthru
        _
      %p751 = scmp.le.s32.totalorder 2, %s11
      // Predicated region
      $region168: #{tc_loss_pallas.1} parent=5 // pred_check
        %p752 = pneg %p751
      $region169: #{tc_loss_pallas.1} parent=5 // pred_check_branch
        %754 = sbr.rel (%p752) target = $region171
      $region170: #{tc_loss_pallas.1} parent=5 // pred_region
        %s755 = ssub.s32 %s11, 2
        // Predicated region
        $region172: #{tc_loss_pallas.1} parent=170 // pred_check
          %p756 = pneg %p151
        $region173: #{tc_loss_pallas.1} parent=170 // pred_check_branch
          %758 = sbr.rel (%p756) target = $region175
        $region174: #{tc_loss_pallas.1} parent=170 // pred_region
          %p759 = scmp.lt.s32.totalorder %s24, 1
          %s760 = scalar_select %p759, %s24, 1
          %p761 = scmp.lt.s32.totalorder %s25, 1
          %s762 = scalar_select %p761, %s25, 1
          %s763 = smul.addr %s762, 4
          %s764 = smul.addr %s760, 8
          %s765 = sadd.s32 %s763, %s764
          %s766 = smul.addr %s765, 8
          %s767 = scalar_lea.vmem %s3, %s766
        $region175: #{tc_loss_pallas.1} parent=170 // pred_fallthru
          _
        // Predicated region
        $region176: #{tc_loss_pallas.1} parent=170 // pred_check
          %p768 = pneg %p179
        $region177: #{tc_loss_pallas.1} parent=170 // pred_check_branch
          %770 = sbr.rel (%p768) target = $region179
        $region178: #{tc_loss_pallas.1} parent=170 // pred_region
          %p771 = scmp.lt.s32.totalorder %s24, 1
          %s772 = scalar_select %p771, %s24, 1
          %p773 = scmp.lt.s32.totalorder %s25, 1
          %s774 = scalar_select %p773, %s25, 1
          %s775 = smul.addr %s774, 4
          %s776 = smul.addr %s772, 8
          %s777 = sadd.s32 %s775, %s776
          %s778 = smul.addr %s777, 8
          %s779 = scalar_lea.vmem %s4, %s778
        $region179: #{tc_loss_pallas.1} parent=170 // pred_fallthru
          _
      $region171: #{tc_loss_pallas.1} parent=5 // pred_fallthru
        _
    $region6: #{tc_loss_pallas.1} parent=1 // loop_footer
      %s15 = sadd.s32 1, %s11
    $region7: #{tc_loss_pallas.1} parent=1 // loop_footer_branch
      %10 = sbr.rel target = $region3
    $region8: #{tc_loss_pallas.1} parent=1 // loop_exit
      _

</llo_original>
